<compile_context>
chip_gen: v7x
topology: tpu7x:2x2x1
jax: 0.10.0
libtpu: 0.0.40
codegen_flags: <defaults>
</compile_context>

<pallas_src>
import jax
import jax.numpy as jnp
from jax.experimental import pallas as pl
from jax.experimental.pallas import tpu as pltpu

_LANES = 128  # vreg lane width


def _gelu_kernel(x_ref, o_ref):
    x = x_ref[...].astype(jnp.float32)
    y = jax.nn.sigmoid(1.702 * x) * x
    o_ref[...] = y.astype(o_ref.dtype)


def _choose_cols(n, max_lane_width):
    """Pick a lane-dense width (multiple of 128), preferring one that divides n."""
    c = max_lane_width
    while c >= _LANES:                  # prefer free-bitcast reshape (no pad/slice)
        if n % c == 0:
            return c
        c //= 2
    c = max_lane_width                  # no exact divisor: largest width <= n (or 128)
    while c > _LANES and c > n:
        c //= 2
    return max(c, _LANES)


def pallas_gelu(x, *, max_lane_width=1024, target_block_bytes=4 << 20,
                donate_input=False):
    """Elementwise GELU (sigmoid form) for arbitrary-shaped arrays."""
    orig_shape = x.shape
    orig_dtype = x.dtype
    n = x.size
    itemsize = jnp.dtype(orig_dtype).itemsize
    pack = max(8, 32 // itemsize)       # sublane packing: 8 f32, 16 bf16, 32 int8

    # ---- lane-dense layout ---------------------------------------------------
    cols = _choose_cols(n, max_lane_width)
    rows = pl.cdiv(n, cols)
    needs_pad = (n % cols) != 0

    # ---- row tile selection (VMEM-aware, sublane-pack aligned) ----------------
    def round_up(v, m):
        return pl.cdiv(v, m) * m

    tm = max(pack, (target_block_bytes // (cols * itemsize)) // pack * pack)
    tm = min(tm, round_up(rows, pack))
    if rows > pack:                     # keep >=2 grid steps so v7x's 2nd TC works
        tm = min(tm, round_up(pl.cdiv(rows, 2), pack))
    tm = max(tm, pack)
    grid = (pl.cdiv(rows, tm),)

    # ---- present the input as a (rows, cols) slab -----------------------------
    if needs_pad:
        pad = rows * cols - n           # at most cols-1 elements
        x2 = jnp.pad(x.reshape(-1), (0, pad)).reshape(rows, cols)
    else:
        x2 = x.reshape(rows, cols)      # free bitcast reshape

    call_kwargs = {}
    if donate_input and not needs_pad:
        call_kwargs["input_output_aliases"] = {0: 0}

    out = pl.pallas_call(
        _gelu_kernel,
        out_shape=jax.ShapeDtypeStruct((rows, cols), orig_dtype),
        grid=grid,
        in_specs=[pl.BlockSpec((tm, cols), lambda i: (i, 0))],
        out_specs=pl.BlockSpec((tm, cols), lambda i: (i, 0)),
        compiler_params=pltpu.CompilerParams(
            dimension_semantics=("parallel",),
            vmem_limit_bytes=32 * 1024 * 1024,
        ),
        cost_estimate=pl.CostEstimate(
            flops=4 * n,
            transcendentals=n,
            bytes_accessed=2 * n * itemsize,
        ),
        **call_kwargs,
    )(x2)

    if needs_pad:
        return out.reshape(-1)[:n].reshape(orig_shape)
    return out.reshape(orig_shape)


def _reference_gelu(x):
    xf = x.astype(jnp.float32)
    return (jax.nn.sigmoid(1.702 * xf) * xf).astype(x.dtype)


if __name__ == "__main__":
    key = jax.random.PRNGKey(0)

    # Primary small example: elementwise module on a (B, C, H, W) activation.
    x = jax.random.normal(key, (2, 4, 16, 16), dtype=jnp.float32)

    gelu_fn = jax.jit(pallas_gelu)
    y = gelu_fn(x)
    jax.block_until_ready(y)

    y_ref = _reference_gelu(x)
    assert y.shape == x.shape and y.dtype == x.dtype
    assert bool(jnp.allclose(y, y_ref, atol=1e-6, rtol=1e-6))

    # Ragged / padded path.
    x_odd = jax.random.normal(jax.random.fold_in(key, 1), (3, 5, 7), dtype=jnp.float32)
    y_odd = jax.block_until_ready(pallas_gelu(x_odd))
    assert bool(jnp.allclose(y_odd, _reference_gelu(x_odd), atol=1e-6, rtol=1e-6))

    # bf16 I/O path (halves HBM traffic; tm rounded to 16-row packing).
    x_bf16 = jax.random.normal(jax.random.fold_in(key, 2), (2, 8, 64), dtype=jnp.bfloat16)
    y_bf16 = jax.block_until_ready(pallas_gelu(x_bf16))
    assert bool(jnp.allclose(y_bf16.astype(jnp.float32),
                             _reference_gelu(x_bf16).astype(jnp.float32),
                             atol=2e-2, rtol=2e-2))

    # Larger f32 case exercising the multi-step grid / no-pad fast path.
    x_big = jax.random.normal(jax.random.fold_in(key, 3), (4, 1536, 128), dtype=jnp.float32)
    y_big = jax.block_until_ready(pallas_gelu(x_big))
    assert bool(jnp.allclose(y_big, _reference_gelu(x_big), atol=1e-6, rtol=1e-6))

    print("KERNEL_OK")
</pallas_src>

<mosaic_0001>
module attributes {stable_mosaic.version = 11 : i64} {
  func.func @_gelu_kernel(%arg0: i32, %arg1: memref<8x1024xf32, #tpu.memory_space<vmem>>, %arg2: memref<8x1024xf32, #tpu.memory_space<vmem>>) attributes {dimension_semantics = [#tpu.dimension_semantics<parallel>], iteration_bounds = array<i64: 1>, scalar_prefetch = 0 : i64, scratch_operands = 0 : i64, tpu.core_type = #tpu.core_type<tc>, window_params = [{transform_indices = @transform_0, window_bounds = array<i64: 8, 1024>}, {transform_indices = @transform_1, window_bounds = array<i64: 8, 1024>}]} {
    %c0 = arith.constant 0 : index
    %c0_0 = arith.constant 0 : index
    %0 = vector.load %arg1[%c0, %c0_0] : memref<8x1024xf32, #tpu.memory_space<vmem>>, vector<8x1024xf32>
    %cst = arith.constant 1.702000e+00 : f32
    %1 = vector.broadcast %cst : f32 to vector<8x1024xf32>
    %2 = arith.mulf %1, %0 : vector<8x1024xf32>
    %3 = arith.negf %2 : vector<8x1024xf32>
    %4 = math.exp %3 : vector<8x1024xf32>
    %cst_1 = arith.constant 1.000000e+00 : f32
    %5 = vector.broadcast %cst_1 : f32 to vector<8x1024xf32>
    %6 = arith.addf %5, %4 : vector<8x1024xf32>
    %7 = arith.divf %5, %6 : vector<8x1024xf32>
    %8 = arith.mulf %7, %0 : vector<8x1024xf32>
    %c0_2 = arith.constant 0 : index
    %c0_3 = arith.constant 0 : index
    %9 = vector.load %arg2[%c0_2, %c0_3] : memref<8x1024xf32, #tpu.memory_space<vmem>>, vector<8x1024xf32>
    tpu.vector_store %arg2[%c0_2, %c0_3], %8 {strides = array<i32>} : memref<8x1024xf32, #tpu.memory_space<vmem>>, vector<8x1024xf32>,
    return
  }
  func.func @transform_0(%arg0: i32) -> (i32, i32) {
    %c0_i32 = arith.constant 0 : i32
    %c0_i32_0 = arith.constant 0 : i32
    return %arg0, %c0_i32 : i32, i32
  }
  func.func @transform_1(%arg0: i32) -> (i32, i32) {
    %c0_i32 = arith.constant 0 : i32
    %c0_i32_0 = arith.constant 0 : i32
    return %arg0, %c0_i32 : i32, i32
  }
}

</mosaic_0001>

<llo_original>
// kernel: pallas_gelu.1
$region0: #{pallas_gelu.1}
  #allocation0 [shape = 'u32[]', space=smem, size = 0x4, offset = 0x4, fixed_abs, tag = 'smem constant byte address 0x4 - core index']
  #allocation1 [shape = 'u32[144,128]{1,0:T(1,128)}', space=vmem, size = 0x12000, scoped, tag = 'internal scratch']
  %s0 = inlined_call_operand.vmem [shape: f32[2,1024], index: 0, kind: input, shape index: {}]
  %s1 = inlined_call_operand.vmem [shape: f32[2,1024], index: 1, kind: output, shape index: {}]
  %s2 = sld [smem:[#allocation0]]
  $region33: #{pallas_gelu.1} parent=0
    _
  %s4 = ssub.s32 1, %s2
  %s5 = scalar_select 0, %s4, %s2
  $region1: #{pallas_gelu.1} parent=0
    #allocation2 [shape = 'u8[32768]{0}', space=vmem, size = 0x8000, scoped, tag = 'output window, operand 0, single buffered']
    // Predicated region
    $region2: #{pallas_gelu.1} parent=1 // pred_check
      _
    $region3: #{pallas_gelu.1} parent=1 // pred_check_branch
      %7 = sbr.rel (0) target = $region5
    $region4: #{pallas_gelu.1} parent=1 // pred_region
      _
    $region5: #{pallas_gelu.1} parent=1 // pred_fallthru
      _
    %v8 = vld [vmem:[%s0] sm:$0xff]
    %v9 = vld [vmem:[%s0 + $0x8] sm:$0xff]
    %v10 = vld [vmem:[%s0 + $0x10] sm:$0xff]
    %v11 = vld [vmem:[%s0 + $0x18] sm:$0xff]
    %v12 = vld [vmem:[%s0 + $0x20] sm:$0xff]
    %v13 = vld [vmem:[%s0 + $0x28] sm:$0xff]
    %v14 = vld [vmem:[%s0 + $0x30] sm:$0xff]
    %v15 = vld [vmem:[%s0 + $0x38] sm:$0xff]
    %v16 = vmul.f32 %v8, 1.702
    %v17 = vmul.f32 %v9, 1.702
    %v18 = vmul.f32 %v10, 1.702
    %v19 = vmul.f32 %v11, 1.702
    %v20 = vmul.f32 %v12, 1.702
    %v21 = vmul.f32 %v13, 1.702
    %v22 = vmul.f32 %v14, 1.702
    %v23 = vmul.f32 %v15, 1.702
    %v24 = vxor.u32 %v16, 2147483648
    %v25 = vxor.u32 %v17, 2147483648
    %v26 = vxor.u32 %v18, 2147483648
    %v27 = vxor.u32 %v19, 2147483648
    %v28 = vxor.u32 %v20, 2147483648
    %v29 = vxor.u32 %v21, 2147483648
    %v30 = vxor.u32 %v22, 2147483648
    %v31 = vxor.u32 %v23, 2147483648
    %v32 = vmul.f32 %v24, 1.442695
    %v33 = vpow.pop %v32
    %v34 = vmul.f32 %v25, 1.442695
    %v35 = vpow.pop %v34
    %v36 = vmul.f32 %v26, 1.442695
    %v37 = vpow.pop %v36
    %v38 = vmul.f32 %v27, 1.442695
    %v39 = vpow.pop %v38
    %v40 = vmul.f32 %v28, 1.442695
    %v41 = vpow.pop %v40
    %v42 = vmul.f32 %v29, 1.442695
    %v43 = vpow.pop %v42
    %v44 = vmul.f32 %v30, 1.442695
    %v45 = vpow.pop %v44
    %v46 = vmul.f32 %v31, 1.442695
    %v47 = vpow.pop %v46
    %v48 = vadd.f32 %v33, 1.0
    %v49 = vadd.f32 %v35, 1.0
    %v50 = vadd.f32 %v37, 1.0
    %v51 = vadd.f32 %v39, 1.0
    %v52 = vadd.f32 %v41, 1.0
    %v53 = vadd.f32 %v43, 1.0
    %v54 = vadd.f32 %v45, 1.0
    %v55 = vadd.f32 %v47, 1.0
    %v56 = vrcp.pop %v48
    %v57 = vmul.f32 1.0, %v56
    %v58 = vrcp.pop %v49
    %v59 = vmul.f32 1.0, %v58
    %v60 = vrcp.pop %v50
    %v61 = vmul.f32 1.0, %v60
    %v62 = vrcp.pop %v51
    %v63 = vmul.f32 1.0, %v62
    %v64 = vrcp.pop %v52
    %v65 = vmul.f32 1.0, %v64
    %v66 = vrcp.pop %v53
    %v67 = vmul.f32 1.0, %v66
    %v68 = vrcp.pop %v54
    %v69 = vmul.f32 1.0, %v68
    %v70 = vrcp.pop %v55
    %v71 = vmul.f32 1.0, %v70
    %v72 = vmul.f32 %v57, %v8
    %v73 = vmul.f32 %v59, %v9
    %v74 = vmul.f32 %v61, %v10
    %v75 = vmul.f32 %v63, %v11
    %v76 = vmul.f32 %v65, %v12
    %v77 = vmul.f32 %v67, %v13
    %v78 = vmul.f32 %v69, %v14
    %v79 = vmul.f32 %v71, %v15
    %80 = vst [vmem:[#allocation2] sm:$0xff] %v72
    %81 = vst [vmem:[#allocation2 + $0x8] sm:$0xff] %v73
    %82 = vst [vmem:[#allocation2 + $0x10] sm:$0xff] %v74
    %83 = vst [vmem:[#allocation2 + $0x18] sm:$0xff] %v75
    %84 = vst [vmem:[#allocation2 + $0x20] sm:$0xff] %v76
    %85 = vst [vmem:[#allocation2 + $0x28] sm:$0xff] %v77
    %86 = vst [vmem:[#allocation2 + $0x30] sm:$0xff] %v78
    %87 = vst [vmem:[#allocation2 + $0x38] sm:$0xff] %v79
    // Predicated region
    $region6: #{pallas_gelu.1} parent=1 // pred_check
      _
    $region7: #{pallas_gelu.1} parent=1 // pred_check_branch
      %89 = sbr.rel (0) target = $region9
    $region8: #{pallas_gelu.1} parent=1 // pred_region
      // Predicated region
      $region10: #{pallas_gelu.1} parent=8 // pred_check
        _
      $region11: #{pallas_gelu.1} parent=8 // pred_check_branch
        %91 = sbr.rel (0) target = $region13
      $region12: #{pallas_gelu.1} parent=8 // pred_region
        // Predicated region
        $region14: #{pallas_gelu.1} parent=12 // pred_check
          _
        $region15: #{pallas_gelu.1} parent=12 // pred_check_branch
          %93 = sbr.rel (0) target = $region17
        $region16: #{pallas_gelu.1} parent=12 // pred_region
          loop: start=0, step=1, limit=1
          $region18: #{pallas_gelu.1} parent=16 // loop_pre_header
            _
          $region19: #{pallas_gelu.1} parent=16 // loop_header
            %s95 = sphi 0, %s99
            %p96 = scmp.ge.s32.totalorder %s95, 1
            %s100 = sphi [#allocation2], [#allocation2]
            %s101 = sphi %s1, %s1
          $region20: #{pallas_gelu.1} parent=16 // loop_header_branch
            %98 = sbr.rel (%p96) target = $region24
          $region21: #{pallas_gelu.1} parent=16 // loop_body
            %v102 = vld [vmem:[%s100] sm:$0xff]
            %103 = vst [vmem:[%s101] sm:$0xff] %v102
            %v104 = vld [vmem:[%s100 + $0x8] sm:$0xff]
            %105 = vst [vmem:[%s101 + $0x8] sm:$0xff] %v104
          $region22: #{pallas_gelu.1} parent=16 // loop_footer
            %s99 = sadd.s32 1, %s95
          $region23: #{pallas_gelu.1} parent=16 // loop_footer_branch
            %94 = sbr.rel target = $region19
          $region24: #{pallas_gelu.1} parent=16 // loop_exit
            _
        $region17: #{pallas_gelu.1} parent=12 // pred_fallthru
          _
        // Predicated region
        $region25: #{pallas_gelu.1} parent=12 // pred_check
          _
        $region26: #{pallas_gelu.1} parent=12 // pred_check_branch
          %107 = sbr.rel target = $region28
        $region27: #{pallas_gelu.1} parent=12 // pred_region
          _
        $region28: #{pallas_gelu.1} parent=12 // pred_fallthru
          _
      $region13: #{pallas_gelu.1} parent=8 // pred_fallthru
        _
      %108 = vnop
    $region9: #{pallas_gelu.1} parent=1 // pred_fallthru
      _
    // Predicated region
    $region29: #{pallas_gelu.1} parent=1 // pred_check
      _
    $region30: #{pallas_gelu.1} parent=1 // pred_check_branch
      %110 = sbr.rel (0) target = $region32
    $region31: #{pallas_gelu.1} parent=1 // pred_region
      _
    $region32: #{pallas_gelu.1} parent=1 // pred_fallthru
      _

</llo_original>
